<compile_context>
chip_gen: v5e
topology: v5e:2x2
jax: 0.10.0
libtpu: 0.0.40
codegen_flags: <defaults>
</compile_context>

<pallas_src>
import jax
import jax.numpy as jnp
from jax.experimental import pallas as pl
from jax.experimental.pallas import tpu as pltpu


# ----------------------------------------------------------------------------
# Pallas kernel: one (Fc, tile_hw) output tile per grid step.
#   out_tile = ReLU( W_eff[b] @ feat[b, :, tile] )
# W_eff arrives pre-scaled and pre-cast; feat is cast in-kernel (no HBM copy).
# ----------------------------------------------------------------------------
def _task_decomp_matmul_kernel(w_eff_ref, feat_ref, o_ref):
    w = w_eff_ref[0]                               # (Fc, Cin), matmul dtype
    x = feat_ref[0].astype(w.dtype)                # in-kernel cast of the tile
    out = jnp.dot(w, x, preferred_element_type=jnp.float32)   # (Fc, tile_hw)
    # ConvModule default activation (ReLU); conv bias unused by PyTorch forward.
    o_ref[0] = jnp.maximum(out, 0.0).astype(o_ref.dtype)


def _vmem_capacity_bytes():
    """Per-core VMEM capacity; conservative fallback if the query fails."""
    try:
        return int(pltpu.get_tpu_info().vmem_capacity_bytes)
    except Exception:  # pragma: no cover - e.g. interpret mode / old jax
        return 64 * 1024 * 1024                    # assume v7x-sized VMEM


def _choose_tile_hw(hw, cin, fc, feat_isz, out_isz, mm_isz, batch, vmem_cap):
    """Largest multiple-of-128 HW tile that fits the generation-aware budget,
    capped at 2048 lanes, and small enough that the grid has >= 4 steps."""
    # ~30% of VMEM for the pipelined tiles; clamp so v7x (64 MiB) stays safe
    # while v5e/v6e (128 MiB) can pick bigger tiles.
    budget = max(12 << 20, min(44 << 20, int(vmem_cap * 0.30)))
    # Bytes per output column: 2x feat tile + 2x out tile (double-buffered)
    # + in-kernel cast temp + f32 accumulator.
    per_col = 2 * (cin * feat_isz + fc * out_isz) + cin * mm_isz + fc * 4
    t = budget // max(per_col, 1)
    t = max(128, min(2048, (t // 128) * 128))
    t = min(t, pl.cdiv(hw, 128) * 128)             # no need to exceed padded HW
    # Keep enough grid steps so both v7x TensorCores get pipelined work.
    while t > 128 and batch * pl.cdiv(hw, t) < 4:
        t = max(128, ((t // 2) // 128) * 128)
    return int(t)


def task_decomposition(feat_nchw, params, feat_channels, stacked_convs,
                       *, tile_hw=None, matmul_dtype=jnp.bfloat16,
                       out_dtype=None):
    """Forward pass of TaskDecomposition.

    feat_nchw : (B, Cin, H, W) with Cin = feat_channels * stacked_convs.
                May be f32 or bf16; the global mean always accumulates in f32.
    matmul_dtype : dtype the feat tile is cast to *inside* the kernel
                (default bf16 so the MXU never becomes the binding slot).
    out_dtype : output dtype (default: same as feat).
    """
    B, C, H, W = feat_nchw.shape
    Fc, S = feat_channels, stacked_convs
    Cin = Fc * S
    assert C == Cin, (C, Cin)
    HW = H * W

    w1 = jnp.asarray(params["la_w1"], jnp.float32)      # (mid, Cin)
    b1 = jnp.asarray(params["la_b1"], jnp.float32)      # (mid,)
    w2 = jnp.asarray(params["la_w2"], jnp.float32)      # (S, mid)
    b2 = jnp.asarray(params["la_b2"], jnp.float32)      # (S,)
    wred = jnp.asarray(params["red_w"], jnp.float32)    # (Fc, Cin)

    mm_dtype = jnp.dtype(matmul_dtype)
    out_dt = jnp.dtype(out_dtype) if out_dtype is not None else feat_nchw.dtype
    feat_isz = jnp.dtype(feat_nchw.dtype).itemsize
    out_isz = out_dt.itemsize
    mm_isz = mm_dtype.itemsize

    # ------------------------------------------------------------------
    # (a) Tiny attention pass + effective weight (XLA, f32 accumulation).
    #     O(B*Cin) MLP work + O(B*Fc*Cin) scaling of the 1x1 weight — both
    #     negligible next to the (Cin, HW) matmul stream, and precomputing
    #     W_eff here keeps all per-tile VALU work out of the kernel.
    # ------------------------------------------------------------------
    feat_flat = feat_nchw.reshape(B, Cin, HW)            # NCHW order, free reshape
    avg = jnp.mean(feat_flat, axis=2, dtype=jnp.float32)             # (B, Cin)
    h1 = jax.nn.relu(avg @ w1.T + b1)                                 # (B, mid)
    attn = jax.nn.sigmoid(h1 @ w2.T + b2)                             # (B, S)
    # per-layer -> per-input-channel attention: attn_full[b, c] = attn[b, c//Fc]
    attn_full = jnp.repeat(attn, Fc, axis=1)                          # (B, Cin)
    # W_eff[b, f, c] = attn_full[b, c] * W_red[f, c]  (tiny, pre-cast to mm dtype)
    w_eff = (attn_full[:, None, :] * wred[None]).astype(mm_dtype)     # (B, Fc, Cin)

    # ------------------------------------------------------------------
    # (b) Main Pallas kernel: out = ReLU(W_eff @ feat), HW-tiled on the lanes.
    # ------------------------------------------------------------------
    vmem_cap = _vmem_capacity_bytes()
    if tile_hw is None:
        tile_hw = _choose_tile_hw(HW, Cin, Fc, feat_isz, out_isz, mm_isz,
                                  B, vmem_cap)
    n_tiles = pl.cdiv(HW, tile_hw)

    # Honest VMEM need: double-buffered feat/out tiles + resident W_eff buffers
    # + in-kernel cast temporary + f32 accumulator.
    need = (2 * (Cin * tile_hw * feat_isz
                 + Fc * tile_hw * out_isz
                 + Fc * Cin * mm_isz)
            + Cin * tile_hw * mm_isz
            + Fc * tile_hw * 4)
    vmem_limit = int(min(vmem_cap - (4 << 20), max(32 << 20, need + (8 << 20))))

    cost = pl.CostEstimate(
        flops=2 * B * Fc * Cin * HW,
        transcendentals=0,
        bytes_accessed=(B * Cin * HW * feat_isz
                        + B * Fc * HW * out_isz
                        + B * Fc * Cin * mm_isz))

    out = pl.pallas_call(
        _task_decomp_matmul_kernel,
        out_shape=jax.ShapeDtypeStruct((B, Fc, HW), out_dt),
        grid_spec=pltpu.PrefetchScalarGridSpec(
            num_scalar_prefetch=0,
            grid=(B, n_tiles),
            in_specs=[
                # Per-batch effective weight; block index constant across the
                # HW-tile axis -> stays resident in VMEM, no per-tile re-DMA.
                pl.BlockSpec((1, Fc, Cin), lambda b, t: (b, 0, 0)),
                # feat tile: HW on the 128-lane axis, cast in-kernel.
                pl.BlockSpec((1, Cin, tile_hw), lambda b, t: (b, 0, t)),
            ],
            out_specs=pl.BlockSpec((1, Fc, tile_hw), lambda b, t: (b, 0, t)),
        ),
        compiler_params=pltpu.CompilerParams(
            dimension_semantics=("parallel", "parallel"),
            vmem_limit_bytes=vmem_limit),
        cost_estimate=cost,
    )(w_eff, feat_flat)

    # (B, Fc, HW) -> NCHW, contiguous (free) reshape.
    return out.reshape(B, Fc, H, W)


def reference(feat, params, Fc, S):
    """Pure-JAX mirror of the PyTorch forward (for validation)."""
    B, C, H, W = feat.shape
    avg = jnp.mean(feat, axis=(2, 3))                                  # (B, C)
    h1 = jax.nn.relu(avg @ params["la_w1"].T + params["la_b1"])
    attn = jax.nn.sigmoid(h1 @ params["la_w2"].T + params["la_b2"])    # (B, S)
    wred = params["red_w"].reshape(Fc, S, Fc)                          # (Fc,S,Fc)
    conv_w = attn[:, None, :, None] * wred[None]                       # (B,Fc,S,Fc)
    conv_w = conv_w.reshape(B, Fc, S * Fc)
    f = feat.reshape(B, C, H * W)
    out = jnp.einsum('bfc,bcp->bfp', conv_w, f).reshape(B, Fc, H, W)
    return jax.nn.relu(out)


if __name__ == "__main__":
    # Small, module-consistent shapes.
    feat_channels = 32
    stacked_convs = 4
    la_down_rate = 8
    B, H, W = 2, 16, 16
    Cin = feat_channels * stacked_convs          # 128
    mid = Cin // la_down_rate                    # 16

    key = jax.random.PRNGKey(0)
    k_feat, k_w1, k_b1, k_w2, k_b2, k_wr = jax.random.split(key, 6)

    feat = jax.random.normal(k_feat, (B, Cin, H, W), jnp.float32)

    # Deterministic parameter init mirroring init_weights():
    #   layer_attention convs ~ Normal(0, 0.001), reduction conv ~ Normal(0, 0.01)
    params = {
        "la_w1": 0.001 * jax.random.normal(k_w1, (mid, Cin), jnp.float32),
        "la_b1": 0.001 * jax.random.normal(k_b1, (mid,), jnp.float32),
        "la_w2": 0.001 * jax.random.normal(k_w2, (stacked_convs, mid), jnp.float32),
        "la_b2": 0.001 * jax.random.normal(k_b2, (stacked_convs,), jnp.float32),
        "red_w": 0.01 * jax.random.normal(k_wr, (feat_channels, Cin), jnp.float32),
        # reduction_conv.conv also owns a bias (norm_cfg is None) but the
        # PyTorch forward never uses it, so it is omitted here on purpose.
    }

    ref = reference(feat, params, feat_channels, stacked_convs)

    # 1) Default path: bf16 matmul via in-kernel cast (no HBM bf16 copy of feat),
    #    auto tile_hw (resolves to 128 here -> grid (2, 2), exercises tiling).
    out = task_decomposition(feat, params, feat_channels, stacked_convs)
    out = jax.block_until_ready(out)
    assert out.shape == (B, feat_channels, H, W)
    assert out.dtype == feat.dtype
    assert jnp.allclose(out, ref, atol=1e-2, rtol=1e-2), \
        f"bf16-matmul max abs err {jnp.max(jnp.abs(out - ref))}"

    # 2) Exact f32 path.
    out_f32 = task_decomposition(feat, params, feat_channels, stacked_convs,
                                 tile_hw=128, matmul_dtype=jnp.float32)
    out_f32 = jax.block_until_ready(out_f32)
    assert jnp.allclose(out_f32, ref, atol=1e-4, rtol=1e-4), \
        f"f32 max abs err {jnp.max(jnp.abs(out_f32 - ref))}"

    # 3) bf16 feat in / bf16 out (halves both dominant HBM streams; mean still
    #    accumulates in f32 inside the wrapper).
    out_bf = task_decomposition(feat.astype(jnp.bfloat16), params,
                                feat_channels, stacked_convs,
                                out_dtype=jnp.bfloat16)
    out_bf = jax.block_until_ready(out_bf)
    assert out_bf.dtype == jnp.bfloat16
    assert jnp.allclose(out_bf.astype(jnp.float32), ref, atol=3e-2, rtol=5e-2), \
        f"bf16-io max abs err {jnp.max(jnp.abs(out_bf.astype(jnp.float32) - ref))}"

    print("KERNEL_OK")
</pallas_src>

<mosaic_0001>
module attributes {stable_mosaic.version = 11 : i64} {
  func.func @_task_decomp_matmul_kernel(%arg0: i32, %arg1: i32, %arg2: memref<1x32x128xbf16, #tpu.memory_space<vmem>>, %arg3: memref<1x128x128xf32, #tpu.memory_space<vmem>>, %arg4: memref<1x32x128xf32, #tpu.memory_space<vmem>>) attributes {dimension_semantics = [#tpu.dimension_semantics<parallel>, #tpu.dimension_semantics<parallel>], iteration_bounds = array<i64: 2, 2>, scalar_prefetch = 0 : i64, scratch_operands = 0 : i64, tpu.core_type = #tpu.core_type<tc>, window_params = [{transform_indices = @transform_0, window_bounds = array<i64: 1, 32, 128>}, {transform_indices = @transform_1, window_bounds = array<i64: 1, 128, 128>}, {transform_indices = @transform_2, window_bounds = array<i64: 1, 32, 128>}]} {
    %c0 = arith.constant 0 : index
    %c0_0 = arith.constant 0 : index
    %c0_1 = arith.constant 0 : index
    %0 = vector.load %arg2[%c0, %c0_0, %c0_1] : memref<1x32x128xbf16, #tpu.memory_space<vmem>>, vector<1x32x128xbf16>
    %1 = vector.shape_cast %0 : vector<1x32x128xbf16> to vector<32x128xbf16>
    %c0_2 = arith.constant 0 : index
    %c0_3 = arith.constant 0 : index
    %c0_4 = arith.constant 0 : index
    %2 = vector.load %arg3[%c0_2, %c0_3, %c0_4] : memref<1x128x128xf32, #tpu.memory_space<vmem>>, vector<1x128x128xf32>
    %3 = vector.shape_cast %2 : vector<1x128x128xf32> to vector<128x128xf32>
    %4 = arith.truncf %3 : vector<128x128xf32> to vector<128x128xbf16>
    %cst = arith.constant dense<0.000000e+00> : vector<32x128xf32>
    %5 = tpu.matmul %1, %4, %cst {dimension_numbers = #tpu.dot_dimension_numbers<[1], [0], [0], [1], [0, 0, 1, 1], [], []>} : vector<32x128xbf16>, vector<128x128xbf16>, vector<32x128xf32> -> vector<32x128xf32>
    %cst_5 = arith.constant 0.000000e+00 : f32
    %6 = vector.broadcast %cst_5 : f32 to vector<32x128xf32>
    %7 = arith.maximumf %5, %6 : vector<32x128xf32>
    %c0_6 = arith.constant 0 : index
    %c0_7 = arith.constant 0 : index
    %c0_8 = arith.constant 0 : index
    %8 = vector.load %arg4[%c0_6, %c0_7, %c0_8] : memref<1x32x128xf32, #tpu.memory_space<vmem>>, vector<1x32x128xf32>
    %9 = vector.shape_cast %8 : vector<1x32x128xf32> to vector<32x128xf32>
    %10 = vector.shape_cast %7 : vector<32x128xf32> to vector<1x32x128xf32>
    tpu.vector_store %arg4[%c0_6, %c0_7, %c0_8], %10 {strides = array<i32>} : memref<1x32x128xf32, #tpu.memory_space<vmem>>, vector<1x32x128xf32>,
    return
  }
  func.func @transform_0(%arg0: i32, %arg1: i32) -> (i32, i32, i32) {
    %c0_i32 = arith.constant 0 : i32
    %c0_i32_0 = arith.constant 0 : i32
    %c0_i32_1 = arith.constant 0 : i32
    return %arg0, %c0_i32, %c0_i32_0 : i32, i32, i32
  }
  func.func @transform_1(%arg0: i32, %arg1: i32) -> (i32, i32, i32) {
    %c0_i32 = arith.constant 0 : i32
    %c0_i32_0 = arith.constant 0 : i32
    return %arg0, %c0_i32, %arg1 : i32, i32, i32
  }
  func.func @transform_2(%arg0: i32, %arg1: i32) -> (i32, i32, i32) {
    %c0_i32 = arith.constant 0 : i32
    %c0_i32_0 = arith.constant 0 : i32
    return %arg0, %c0_i32, %arg1 : i32, i32, i32
  }
}

</mosaic_0001>

<llo_original>
// kernel: tpu_custom_call.1
$region0: #{tpu_custom_call.1}
  #allocation0 [shape = 'u32[]', space=smem, size = 0x4, offset = 0x4, fixed_abs, tag = 'smem constant byte address 0x4 - core index']
  #allocation1 [shape = 'u32[72,128]{1,0:T(1,128)}', space=vmem, size = 0x9000, scoped, tag = 'internal scratch']
  %s0 = inlined_call_operand.hbm [shape: bf16[2,32,128], index: 0, kind: input, shape index: {}]
  %s1 = inlined_call_operand.hbm [shape: f32[2,128,256], index: 1, kind: input, shape index: {}]
  %s2 = inlined_call_operand.hbm [shape: f32[2,32,256], index: 2, kind: output, shape index: {}]
  %s3 = sld [smem:[#allocation0]]
  $region49: #{tpu_custom_call.1} parent=0
    _
  %s5 = ssub.s32 1, %s3
  %s6 = scalar_select 0, %s5, %s3
  $region1: #{tpu_custom_call.1} parent=0
    #allocation2 [shape = 'u8[16384]{0}', space=vmem, size = 0x4000, scoped, tag = 'input window, operand 0']
    #allocation3 [shape = 's32[2]{0}', space=sflag, size = 0x8, scoped, tag = 'scoped memory for tpu_custom_call.1']
    #allocation4 [shape = 's32[2]{0}', space=sflag, size = 0x8, scoped, tag = 'scoped memory for tpu_custom_call.1']
    #allocation5 [shape = 'u8[131072]{0}', space=vmem, size = 0x20000, scoped, tag = 'input window, operand 1']
    #allocation6 [shape = 's32[2]{0}', space=sflag, size = 0x8, scoped, tag = 'scoped memory for tpu_custom_call.1']
    #allocation7 [shape = 'u8[32768]{0}', space=vmem, size = 0x8000, scoped, tag = 'output window, operand 0']
    %7 = vsyncpa [#allocation3], 0
    %s8 = scalar_lea.sflag [#allocation3], 1
    %9 = vsyncpa %s8, 0
    %10 = vsyncpa [#allocation6], 0
    %s11 = scalar_lea.sflag [#allocation6], 1
    %12 = vsyncpa %s11, 0
    %13 = vsyncpa [#allocation4], 0
    %s14 = scalar_lea.sflag [#allocation4], 1
    %15 = vsyncpa %s14, 0
    loop: start=0, step=1, limit=6
    $region2: #{tpu_custom_call.1} parent=1 // loop_pre_header
      _
    $region3: #{tpu_custom_call.1} parent=1 // loop_header
      %s17 = sphi 0, %s21
      %p18 = scmp.ge.s32.totalorder %s17, 6
      %s24 = sphi 0, %s36
      %s25 = sphi 0, %s32
      %s26 = sphi 0, %s24
      %s27 = sphi 0, %s25
      %s28 = sphi 0, %s26
      %s29 = sphi 0, %s27
      %s39 = sphi 0, %s41
      %s42 = sphi 0, %s39
      %s43 = sphi 0, %s42
      %s59 = sphi 0, %s43
      %s67 = sphi 0, %s69
      %s70 = sphi 0, %s67
      %s71 = sphi 0, %s70
      %s87 = sphi 0, %s71
      %s95 = sphi 0, %s97
      %s98 = sphi 0, %s95
      %s99 = sphi 0, %s98
      %s115 = sphi 0, %s99
    $region4: #{tpu_custom_call.1} parent=1 // loop_header_branch
      %20 = sbr.rel (%p18) target = $region8
    $region5: #{tpu_custom_call.1} parent=1 // loop_body
      %s22 = ssub.s32 %s17, 1
      %s23 = ssub.s32 %s17, 2
      %s30 = sadd.s32 1, %s25
      %p31 = scmp.ge.s32.totalorder %s30, 2
      %s32 = scalar_select %p31, 0, %s30
      %s33 = sadd.s32 1, %s24
      %s34 = scalar_select %p31, %s33, %s24
      %p35 = scmp.ge.s32.totalorder %s34, 2
      %s36 = scalar_select %p35, 0, %s34
      %s37 = ssub.s32 %s24, %s36
      %p38 = scmp.eq.s32.totalorder %s37, 0
      %s40 = sadd.s32 %s39, 1
      %s41 = scalar_select %p38, %s39, %s40
      %p44 = pneg %p38
      %p45 = scmp.eq.s32.totalorder %s17, 3
      %p46 = por %p44, %p45
      %p47 = scmp.ne.s32.totalorder %s39, %s42
      %p48 = scmp.eq.s32.totalorder %s17, 0
      %p49 = por %p47, %p48
      %p50 = scmp.ne.s32.totalorder %s39, %s42
      %p51 = scmp.eq.s32.totalorder %s22, 3
      %p52 = por %p50, %p51
      %p53 = scmp.ne.s32.totalorder %s42, %s43
      %p54 = scmp.eq.s32.totalorder %s22, 0
      %p55 = por %p53, %p54
      %p56 = scmp.ne.s32.totalorder %s42, %s43
      %p57 = scmp.eq.s32.totalorder %s23, 3
      %p58 = por %p56, %p57
      %p60 = scmp.ne.s32.totalorder %s43, %s59
      %p61 = scmp.eq.s32.totalorder %s23, 0
      %p62 = por %p60, %p61
      %s63 = ssub.s32 %s24, %s36
      %s64 = ssub.s32 %s25, %s32
      %s65 = sor.u32 %s63, %s64
      %p66 = scmp.eq.s32.totalorder %s65, 0
      %s68 = sadd.s32 %s67, 1
      %s69 = scalar_select %p66, %s67, %s68
      %p72 = pneg %p66
      %p73 = scmp.eq.s32.totalorder %s17, 3
      %p74 = por %p72, %p73
      %p75 = scmp.ne.s32.totalorder %s67, %s70
      %p76 = scmp.eq.s32.totalorder %s17, 0
      %p77 = por %p75, %p76
      %p78 = scmp.ne.s32.totalorder %s67, %s70
      %p79 = scmp.eq.s32.totalorder %s22, 3
      %p80 = por %p78, %p79
      %p81 = scmp.ne.s32.totalorder %s70, %s71
      %p82 = scmp.eq.s32.totalorder %s22, 0
      %p83 = por %p81, %p82
      %p84 = scmp.ne.s32.totalorder %s70, %s71
      %p85 = scmp.eq.s32.totalorder %s23, 3
      %p86 = por %p84, %p85
      %p88 = scmp.ne.s32.totalorder %s71, %s87
      %p89 = scmp.eq.s32.totalorder %s23, 0
      %p90 = por %p88, %p89
      %s91 = ssub.s32 %s24, %s36
      %s92 = ssub.s32 %s25, %s32
      %s93 = sor.u32 %s91, %s92
      %p94 = scmp.eq.s32.totalorder %s93, 0
      %s96 = sadd.s32 %s95, 1
      %s97 = scalar_select %p94, %s95, %s96
      %p100 = pneg %p94
      %p101 = scmp.eq.s32.totalorder %s17, 3
      %p102 = por %p100, %p101
      %p103 = scmp.ne.s32.totalorder %s95, %s98
      %p104 = scmp.eq.s32.totalorder %s17, 0
      %p105 = por %p103, %p104
      %p106 = scmp.ne.s32.totalorder %s95, %s98
      %p107 = scmp.eq.s32.totalorder %s22, 3
      %p108 = por %p106, %p107
      %p109 = scmp.ne.s32.totalorder %s98, %s99
      %p110 = scmp.eq.s32.totalorder %s22, 0
      %p111 = por %p109, %p110
      %p112 = scmp.ne.s32.totalorder %s98, %s99
      %p113 = scmp.eq.s32.totalorder %s23, 3
      %p114 = por %p112, %p113
      %p116 = scmp.ne.s32.totalorder %s99, %s115
      %p117 = scmp.eq.s32.totalorder %s23, 0
      %p118 = por %p116, %p117
      %p119 = scmp.le.s32.totalorder 1, %s17
      %p120 = scmp.lt.s32.totalorder %s17, 5
      %p121 = pnand %p119, %p120
      %p122 = pneg %p121
      // Predicated region
      $region9: #{tpu_custom_call.1} parent=5 // pred_check
        _
      $region10: #{tpu_custom_call.1} parent=5 // pred_check_branch
        %124 = sbr.rel (%p121) target = $region12
      $region11: #{tpu_custom_call.1} parent=5 // pred_region
        %s125 = ssub.s32 %s17, 1
      $region12: #{tpu_custom_call.1} parent=5 // pred_fallthru
        _
      %p126 = scmp.lt.s32.totalorder %s17, 4
      // Predicated region
      $region13: #{tpu_custom_call.1} parent=5 // pred_check
        %p127 = pneg %p126
      $region14: #{tpu_custom_call.1} parent=5 // pred_check_branch
        %129 = sbr.rel (%p127) target = $region16
      $region15: #{tpu_custom_call.1} parent=5 // pred_region
        // Predicated region
        $region17: #{tpu_custom_call.1} parent=15 // pred_check
          %p130 = pneg %p49
        $region18: #{tpu_custom_call.1} parent=15 // pred_check_branch
          %132 = sbr.rel (%p130) target = $region20
        $region19: #{tpu_custom_call.1} parent=15 // pred_region
          %s133 = sand.u32 %s39, 1
          %s134 = scalar_lea.sflag [#allocation3], %s133
          %s135 = sand.u32 %s39, 1
          %s136 = smul.addr %s135, 16
          %s137 = scalar_lea.vmem [#allocation2], %s136
          %139 = vsyncadd %s134, 0
          %s140 = smul.addr %s24, 4
          %s141 = smul.addr %s140, 4
          %s142 = scalar_lea.hbm %s0, %s141
          %s143 = sshll.u32 %s142, 4
          %s144 = int_to_ptr.hbm [resolvable:$true] %s143
          %s145 = sshll.u32 %s137, 4
          %s146 = int_to_ptr.vmem [resolvable:$true] %s145
          %151 = dma.hbm_to_vmem [thread:$0]  %s144, 256, %s146, %s134, 64, 64, 4
        $region20: #{tpu_custom_call.1} parent=15 // pred_fallthru
          _
        // Predicated region
        $region21: #{tpu_custom_call.1} parent=15 // pred_check
          %p152 = pneg %p77
        $region22: #{tpu_custom_call.1} parent=15 // pred_check_branch
          %154 = sbr.rel (%p152) target = $region24
        $region23: #{tpu_custom_call.1} parent=15 // pred_region
          %s155 = sand.u32 %s67, 1
          %s156 = scalar_lea.sflag [#allocation6], %s155
          %s157 = sand.u32 %s67, 1
          %s158 = smul.addr %s157, 128
          %s159 = scalar_lea.vmem [#allocation5], %s158
          %161 = vsyncadd %s156, 0
          %s162 = smul.addr %s24, 32
          %s163 = sadd.s32 %s25, %s162
          %s164 = smul.addr %s163, 8
          %s165 = scalar_lea.hbm %s1, %s164
          %s166 = sshll.u32 %s165, 4
          %s167 = int_to_ptr.hbm [resolvable:$true] %s166
          %s168 = sshll.u32 %s159, 4
          %s169 = int_to_ptr.vmem [resolvable:$true] %s168
          %174 = dma.hbm_to_vmem [thread:$0]  %s167, 2048, %s169, %s156, 256, 128, 8
        $region24: #{tpu_custom_call.1} parent=15 // pred_fallthru
          _
      $region16: #{tpu_custom_call.1} parent=5 // pred_fallthru
        _
      %p175 = scmp.le.s32.totalorder 1, %s17
      %p176 = scmp.lt.s32.totalorder %s17, 5
      %p177 = pnand %p175, %p176
      %p178 = pneg %p177
      // Predicated region
      $region25: #{tpu_custom_call.1} parent=5 // pred_check
        _
      $region26: #{tpu_custom_call.1} parent=5 // pred_check_branch
        %180 = sbr.rel (%p177) target = $region28
      $region27: #{tpu_custom_call.1} parent=5 // pred_region
        %s181 = ssub.s32 %s17, 1
        %s182 = sand.u32 %s42, 1
        %s183 = scalar_lea.sflag [#allocation3], %s182
        %s184 = sand.u32 %s42, 1
        %s185 = smul.addr %s184, 16
        %s186 = scalar_lea.vmem [#allocation2], %s185
        // Predicated region
        $region29: #{tpu_custom_call.1} parent=27 // pred_check
          %p187 = pneg %p55
        $region30: #{tpu_custom_call.1} parent=27 // pred_check_branch
          %189 = sbr.rel (%p187) target = $region32
        $region31: #{tpu_custom_call.1} parent=27 // pred_region
          %191 = dma.done %s183, 256
        $region32: #{tpu_custom_call.1} parent=27 // pred_fallthru
          _
        %s192 = sand.u32 %s70, 1
        %s193 = scalar_lea.sflag [#allocation6], %s192
        %s194 = sand.u32 %s70, 1
        %s195 = smul.addr %s194, 128
        %s196 = scalar_lea.vmem [#allocation5], %s195
        // Predicated region
        $region33: #{tpu_custom_call.1} parent=27 // pred_check
          %p197 = pneg %p83
        $region34: #{tpu_custom_call.1} parent=27 // pred_check_branch
          %199 = sbr.rel (%p197) target = $region36
        $region35: #{tpu_custom_call.1} parent=27 // pred_region
          %201 = dma.done %s193, 2048
        $region36: #{tpu_custom_call.1} parent=27 // pred_fallthru
          _
        %s202 = sand.u32 %s42, 1
        %s203 = scalar_lea.sflag [#allocation3], %s202
        %s204 = sand.u32 %s42, 1
        %s205 = smul.addr %s204, 16
        %s206 = scalar_lea.vmem [#allocation2], %s205
        %p207 = pneg %p55
        %p208 = pneg %p52
        %s209 = sand.u32 %s70, 1
        %s210 = scalar_lea.sflag [#allocation6], %s209
        %s211 = sand.u32 %s70, 1
        %s212 = smul.addr %s211, 128
        %s213 = scalar_lea.vmem [#allocation5], %s212
        %p214 = pneg %p83
        %p215 = pneg %p80
        %p216 = pneg %p111
        %p217 = pneg %p108
        %s218 = sand.u32 %s98, 1
        %s219 = scalar_lea.sflag [#allocation4], %s218
        %s220 = sand.u32 %s98, 1
        %s221 = smul.addr %s220, 32
        %s222 = scalar_lea.vmem [#allocation7], %s221
        %v223 = vld [vmem:[%s186] sm:$0xf]
        %v224 = vld [vmem:[%s186 + $0x4] sm:$0xf]
        %v225 = vld [vmem:[%s186 + $0x8] sm:$0xf]
        %v226 = vld [vmem:[%s186 + $0xc] sm:$0xf]
        %v227 = vld [vmem:[%s196] sm:$0xff]
        %v228 = vld [vmem:[%s196 + $0x8] sm:$0xff]
        %v229 = vld [vmem:[%s196 + $0x10] sm:$0xff]
        %v230 = vld [vmem:[%s196 + $0x18] sm:$0xff]
        %v231 = vld [vmem:[%s196 + $0x20] sm:$0xff]
        %v232 = vld [vmem:[%s196 + $0x28] sm:$0xff]
        %v233 = vld [vmem:[%s196 + $0x30] sm:$0xff]
        %v234 = vld [vmem:[%s196 + $0x38] sm:$0xff]
        %v235 = vld [vmem:[%s196 + $0x40] sm:$0xff]
        %v236 = vld [vmem:[%s196 + $0x48] sm:$0xff]
        %v237 = vld [vmem:[%s196 + $0x50] sm:$0xff]
        %v238 = vld [vmem:[%s196 + $0x58] sm:$0xff]
        %v239 = vld [vmem:[%s196 + $0x60] sm:$0xff]
        %v240 = vld [vmem:[%s196 + $0x68] sm:$0xff]
        %v241 = vld [vmem:[%s196 + $0x70] sm:$0xff]
        %v242 = vld [vmem:[%s196 + $0x78] sm:$0xff]
        %v243 = vpack.c.bf16 %v228, %v227
        %v244 = vpack.c.bf16 %v230, %v229
        %v245 = vpack.c.bf16 %v232, %v231
        %v246 = vpack.c.bf16 %v234, %v233
        %v247 = vpack.c.bf16 %v236, %v235
        %v248 = vpack.c.bf16 %v238, %v237
        %v249 = vpack.c.bf16 %v240, %v239
        %v250 = vpack.c.bf16 %v242, %v241
        %v255 = vunpack.c.l.b16 %v223
        %v256 = vunpack.c.l.b16 %v224
        %v257 = vunpack.c.l.b16 %v225
        %v258 = vunpack.c.l.b16 %v226
        %v259 = vpack.c.b16 %v256, %v255
        %v260 = vpack.c.b16 %v258, %v257
        %263 = vmatpush.bf16.msra.mxu0 %v250
        %264 = vmatpush.bf16.msra.mxu0 %v249
        %265 = vmatpush.bf16.msra.mxu0 %v248
        %266 = vmatpush.bf16.msra.mxu0 %v247
        %267 = vmatpush.bf16.msra.mxu0 %v246
        %268 = vmatpush.bf16.msra.mxu0 %v245
        %269 = vmatpush.bf16.msra.mxu0 %v244
        %270 = vmatpush.bf16.msra.mxu0 %v243
        %271 = vmatmul.bf16.gmra.mxu0 %v259
        %v272 = vpop.f32.mrf.mxu0
        %v273 = vadd.f32 0.0, %v272
        %v274 = vpop.f32.mrf.mxu0
        %v275 = vadd.f32 0.0, %v274
        %276 = vmatmul.bf16.gmra.mxu0 %v260
        %v277 = vpop.f32.mrf.mxu0
        %v278 = vadd.f32 0.0, %v277
        %v279 = vpop.f32.mrf.mxu0
        %v280 = vadd.f32 0.0, %v279
        %281 = vdwg.mxu0
        %v282 = vmax.f32 %v273, 0.0
        %v283 = vmax.f32 %v275, 0.0
        %v284 = vmax.f32 %v278, 0.0
        %v285 = vmax.f32 %v280, 0.0
        %286 = vst [vmem:[%s222] sm:$0xff] %v282
        %287 = vst [vmem:[%s222 + $0x8] sm:$0xff] %v283
        %288 = vst [vmem:[%s222 + $0x10] sm:$0xff] %v284
        %289 = vst [vmem:[%s222 + $0x18] sm:$0xff] %v285
        %s290 = sand.u32 %s98, 1
        %s291 = scalar_lea.sflag [#allocation4], %s290
        %s292 = sand.u32 %s98, 1
        %s293 = smul.addr %s292, 32
        %s294 = scalar_lea.vmem [#allocation7], %s293
        // Predicated region
        $region37: #{tpu_custom_call.1} parent=27 // pred_check
          %p295 = pneg %p108
        $region38: #{tpu_custom_call.1} parent=27 // pred_check_branch
          %297 = sbr.rel (%p295) target = $region40
        $region39: #{tpu_custom_call.1} parent=27 // pred_region
          %299 = vsyncadd %s291, 0
          %s300 = smul.addr %s26, 8
          %s301 = sadd.s32 %s27, %s300
          %s302 = smul.addr %s301, 8
          %s303 = scalar_lea.hbm %s2, %s302
          %s304 = sshll.u32 %s294, 4
          %s305 = int_to_ptr.vmem [resolvable:$true] %s304
          %s306 = sshll.u32 %s303, 4
          %s307 = int_to_ptr.hbm [resolvable:$true] %s306
          %312 = dma.vmem_to_hbm [thread:$0]  %s305, 512, %s307, %s291, 128, 256, 8
        $region40: #{tpu_custom_call.1} parent=27 // pred_fallthru
          _
      $region28: #{tpu_custom_call.1} parent=5 // pred_fallthru
        _
      %p313 = scmp.le.s32.totalorder 2, %s17
      // Predicated region
      $region41: #{tpu_custom_call.1} parent=5 // pred_check
        %p314 = pneg %p313
      $region42: #{tpu_custom_call.1} parent=5 // pred_check_branch
        %316 = sbr.rel (%p314) target = $region44
      $region43: #{tpu_custom_call.1} parent=5 // pred_region
        %s317 = ssub.s32 %s17, 2
        // Predicated region
        $region45: #{tpu_custom_call.1} parent=43 // pred_check
          %p318 = pneg %p114
        $region46: #{tpu_custom_call.1} parent=43 // pred_check_branch
          %320 = sbr.rel (%p318) target = $region48
        $region47: #{tpu_custom_call.1} parent=43 // pred_region
          %s321 = sand.u32 %s99, 1
          %s322 = scalar_lea.sflag [#allocation4], %s321
          %s323 = sand.u32 %s99, 1
          %s324 = smul.addr %s323, 32
          %s325 = scalar_lea.vmem [#allocation7], %s324
          %327 = dma.done %s322, 512
        $region48: #{tpu_custom_call.1} parent=43 // pred_fallthru
          _
      $region44: #{tpu_custom_call.1} parent=5 // pred_fallthru
        _
    $region6: #{tpu_custom_call.1} parent=1 // loop_footer
      %s21 = sadd.s32 1, %s17
    $region7: #{tpu_custom_call.1} parent=1 // loop_footer_branch
      %16 = sbr.rel target = $region3
    $region8: #{tpu_custom_call.1} parent=1 // loop_exit
      _
    %328 = vsyncpa [#allocation3], 1
    %s329 = scalar_lea.sflag [#allocation3], 1
    %330 = vsyncpa %s329, 1
    %331 = vsyncpa [#allocation6], 1
    %s332 = scalar_lea.sflag [#allocation6], 1
    %333 = vsyncpa %s332, 1
    %334 = vsyncpa [#allocation4], 1
    %s335 = scalar_lea.sflag [#allocation4], 1
    %336 = vsyncpa %s335, 1

</llo_original>
